<compile_context>
chip_gen: v7x
topology: tpu7x:2x2x1
jax: 0.10.0
libtpu: 0.0.40
codegen_flags: <defaults>
</compile_context>

<pallas_src>
import functools

import jax
import jax.numpy as jnp
from jax.experimental import pallas as pl
from jax.experimental.pallas import tpu as pltpu


def _round_up(x, m):
    return ((x + m - 1) // m) * m


def _dice_partial_kernel(x_ref, t_ref, inter_ref, total_ref, *,
                         hw, tile_lanes, tiles_per_split, padded):
    # x_ref    : (1, C, T)     logits block (native dtype) for batch n, split s, tile h
    # t_ref    : (1, 1, T)     int8/int32 class ids (padded cols hold -1)
    # inter_ref: (1, 1, C, 1)  per-(n, split) intersection accumulator (resident)
    # total_ref: (1, 1, C, 1)  per-(n, split) total accumulator (resident)
    h = pl.program_id(2)

    @pl.when(h == 0)
    def _():
        inter_ref[...] = jnp.zeros_like(inter_ref)
        total_ref[...] = jnp.zeros_like(total_ref)

    x = x_ref[0].astype(jnp.float32)               # (C, T)
    t = t_ref[0].astype(jnp.int32)                 # (1, T)
    C, _ = x.shape

    # --- softmax over the channel (sublane) axis ---------------------------
    m = jnp.max(x, axis=0, keepdims=True)          # (1, T)
    e = jnp.exp(x - m)                             # (C, T)
    denom = jnp.sum(e, axis=0, keepdims=True)      # (1, T)
    # EUP approximate reciprocal + one Newton-Raphson step -> ~f32 accuracy,
    # moves the per-pixel divide onto the otherwise idle EUP slot.
    inv = pl.reciprocal(denom, approx=True)
    inv = inv * (2.0 - denom * inv)
    p = e * inv                                    # (C, T)

    # --- one-hot hits via broadcast of a (C, 1) class iota ------------------
    cls = jax.lax.broadcasted_iota(jnp.int32, (C, 1), 0)
    hit = cls == t                                 # (C, T) bool; padded cols False

    inter_part = jnp.sum(jnp.where(hit, p, 0.0), axis=1, keepdims=True)   # (C, 1)
    p_sum = jnp.sum(p, axis=1, keepdims=True)                             # (C, 1)
    cnt = jnp.sum(hit.astype(jnp.float32), axis=1, keepdims=True)         # (C, 1)

    inter_ref[...] += inter_part.reshape(1, 1, C, 1)
    total_ref[...] += (p_sum + cnt).reshape(1, 1, C, 1)

    # --- padding correction, only on tiles that actually contain padding ----
    if padded:
        s = pl.program_id(1)
        base = (s * tiles_per_split + h) * tile_lanes

        @pl.when(base + tile_lanes > hw)
        def _():
            col = base + jax.lax.broadcasted_iota(jnp.int32, (1, tile_lanes), 1)
            pad_mass = jnp.sum(jnp.where(col >= hw, p, 0.0), axis=1, keepdims=True)
            total_ref[...] -= pad_mass.reshape(1, 1, C, 1)


def _vmem_capacity_bytes():
    try:
        return int(pltpu.get_tpu_info().vmem_capacity_bytes)
    except Exception:
        return 64 * 1024 * 1024    # conservative (v7x per-TC) fallback


def dice_loss(inputs, targets, smooth=1.0, hw_tile=None, spatial_splits=None):
    """inputs: (N, C, H, W) float logits (any float dtype);
    targets: (N, H, W) integer class ids."""
    N, C, H, W = inputs.shape
    HW = H * W
    in_itemsize = jnp.dtype(inputs.dtype).itemsize

    # --- per-generation VMEM sizing -----------------------------------------
    vmem_cap = _vmem_capacity_bytes()
    vmem_limit = int(max(min(0.8 * vmem_cap, 112 * 1024 * 1024), 32 * 1024 * 1024))

    if hw_tile is None:
        # Size the spatial tile so ~6 live (C, T) f32 temps plus the
        # double-buffered input blocks fit in roughly half of VMEM.
        temp_budget = max(vmem_cap // 2, 24 * 1024 * 1024)
        c_pad = _round_up(C, 8)
        bytes_per_lane = c_pad * (6 * 4 + 2 * in_itemsize) + 2 * 4
        max_tile = (temp_budget // bytes_per_lane) // 128 * 128
        max_tile = max(128, min(max_tile, 128 * 1024))
    else:
        max_tile = _round_up(int(hw_tile), 128)

    # --- spatial split: keep both v7x TensorCores busy when N is tiny -------
    num_hw = pl.cdiv(HW, max_tile)
    if spatial_splits is None:
        spatial_splits = 2 if (N == 1 and num_hw >= 2) else 1
    n_split = max(1, min(int(spatial_splits), num_hw))

    # --- balanced tiling: pick tile count first, then the per-tile width ----
    tiles_per_split = pl.cdiv(num_hw, n_split)
    num_hw = n_split * tiles_per_split
    tile_lanes = _round_up(pl.cdiv(HW, num_hw), 128)
    hw_padded = num_hw * tile_lanes
    padded = hw_padded != HW

    # Keep logits at native dtype (bf16 halves HBM traffic); cast in-kernel.
    x = inputs.reshape(N, C, HW)
    # Narrow targets in HBM when possible (4x less target traffic).
    t_dtype = jnp.int8 if C <= 127 else jnp.int32
    t = targets.reshape(N, 1, HW).astype(t_dtype)

    if padded:
        pad = hw_padded - HW
        x = jnp.pad(x, ((0, 0), (0, 0), (0, pad)))
        # Out-of-range class id so padded columns never hit the one-hot.
        t = jnp.pad(t, ((0, 0), (0, 0), (0, pad)), constant_values=-1)

    kernel = functools.partial(
        _dice_partial_kernel, hw=HW, tile_lanes=tile_lanes,
        tiles_per_split=tiles_per_split, padded=padded)

    inter, total = pl.pallas_call(
        kernel,
        out_shape=(jax.ShapeDtypeStruct((N, n_split, C, 1), jnp.float32),
                   jax.ShapeDtypeStruct((N, n_split, C, 1), jnp.float32)),
        grid_spec=pltpu.PrefetchScalarGridSpec(
            num_scalar_prefetch=0,
            grid=(N, n_split, tiles_per_split),     # batch, split, spatial tiles
            in_specs=[
                pl.BlockSpec((1, C, tile_lanes),
                             lambda n, s, h: (n, 0, s * tiles_per_split + h)),
                pl.BlockSpec((1, 1, tile_lanes),
                             lambda n, s, h: (n, 0, s * tiles_per_split + h)),
            ],
            out_specs=[
                pl.BlockSpec((1, 1, C, 1), lambda n, s, h: (n, s, 0, 0)),
                pl.BlockSpec((1, 1, C, 1), lambda n, s, h: (n, s, 0, 0)),
            ],
        ),
        compiler_params=pltpu.CompilerParams(
            # (batch, split) parallel (megacore sharding), tile axis is the reduction
            dimension_semantics=("parallel", "parallel", "arbitrary"),
            vmem_limit_bytes=vmem_limit,
        ),
    )(x, t)

    # Tiny (N * n_split * C elements) finalize left in plain JAX.
    inter = jnp.sum(inter[..., 0], axis=1)          # (N, C)
    total = jnp.sum(total[..., 0], axis=1)          # (N, C)
    dice = (2.0 * inter + smooth) / (total + smooth)
    return jnp.mean(1.0 - dice)


def _dice_loss_ref(inputs, targets, smooth=1.0):
    """Pure-JAX reference mirroring the PyTorch module exactly."""
    probs = jax.nn.softmax(inputs.astype(jnp.float32), axis=1)       # (N,C,H,W)
    onehot = jax.nn.one_hot(targets, inputs.shape[1], dtype=jnp.float32)
    onehot = jnp.transpose(onehot, (0, 3, 1, 2))                     # (N,C,H,W)
    inter = jnp.sum(probs * onehot, axis=(2, 3))
    total = jnp.sum(probs + onehot, axis=(2, 3))
    dice = (2.0 * inter + smooth) / (total + smooth)
    return jnp.mean(1.0 - dice)


if __name__ == "__main__":
    key = jax.random.PRNGKey(0)
    k1, k2, k3, k4, k5, k6 = jax.random.split(key, 6)

    # Case 1: canonical small shape, single spatial tile.
    N, C, H, W = 2, 4, 16, 16
    x = jax.random.normal(k1, (N, C, H, W), dtype=jnp.float32)
    t = jax.random.randint(k2, (N, H, W), 0, C, dtype=jnp.int32)
    out = jax.block_until_ready(dice_loss(x, t, smooth=1.0))
    ref = jax.block_until_ready(_dice_loss_ref(x, t, smooth=1.0))
    assert jnp.allclose(out, ref, atol=1e-5, rtol=1e-5), ("case1", out, ref)

    # Case 2: force multiple spatial tiles (exercises the accumulator path).
    out2 = jax.block_until_ready(dice_loss(x, t, smooth=1.0, hw_tile=128))
    assert jnp.allclose(out2, ref, atol=1e-5, rtol=1e-5), ("case2", out2, ref)

    # Case 3: spatial size not a multiple of 128 (padding correction), odd C.
    C3, H3, W3 = 5, 12, 12
    x3 = jax.random.normal(k3, (N, C3, H3, W3), dtype=jnp.float32)
    t3 = jax.random.randint(k4, (N, H3, W3), 0, C3, dtype=jnp.int32)
    out3 = jax.block_until_ready(dice_loss(x3, t3, smooth=1.0))
    ref3 = jax.block_until_ready(_dice_loss_ref(x3, t3, smooth=1.0))
    assert jnp.allclose(out3, ref3, atol=1e-5, rtol=1e-5), ("case3", out3, ref3)

    # Case 4: bf16 logits pass through at native width (half the HBM traffic).
    xb = x.astype(jnp.bfloat16)
    out4 = jax.block_until_ready(dice_loss(xb, t, smooth=1.0))
    ref4 = jax.block_until_ready(_dice_loss_ref(xb, t, smooth=1.0))
    assert jnp.allclose(out4, ref4, atol=1e-4, rtol=1e-4), ("case4", out4, ref4)

    # Case 5: N == 1 -> spatial reduction split across 2 parallel chunks (keeps
    # both v7x TensorCores busy); also multi-tile per chunk with padding that
    # spans a partially-padded tile and a fully-padded tile.
    C5, H5, W5 = 3, 17, 19
    x5 = jax.random.normal(k5, (1, C5, H5, W5), dtype=jnp.float32)
    t5 = jax.random.randint(k6, (1, H5, W5), 0, C5, dtype=jnp.int32)
    out5 = jax.block_until_ready(dice_loss(x5, t5, smooth=1.0, hw_tile=128))
    ref5 = jax.block_until_ready(_dice_loss_ref(x5, t5, smooth=1.0))
    assert jnp.allclose(out5, ref5, atol=1e-5, rtol=1e-5), ("case5", out5, ref5)

    print("KERNEL_OK")
</pallas_src>

<mosaic_0001>
module attributes {stable_mosaic.version = 11 : i64} {
  func.func @_dice_partial_kernel(%arg0: i32, %arg1: i32, %arg2: i32, %arg3: memref<1x4x256xf32, #tpu.memory_space<vmem>>, %arg4: memref<1x1x256xi8, #tpu.memory_space<vmem>>, %arg5: memref<1x1x4x1xf32, #tpu.memory_space<vmem>>, %arg6: memref<1x1x4x1xf32, #tpu.memory_space<vmem>>) attributes {dimension_semantics = [#tpu.dimension_semantics<parallel>, #tpu.dimension_semantics<parallel>, #tpu.dimension_semantics<arbitrary>], iteration_bounds = array<i64: 2, 1, 1>, scalar_prefetch = 0 : i64, scratch_operands = 0 : i64, tpu.core_type = #tpu.core_type<tc>, window_params = [{transform_indices = @transform_0, window_bounds = array<i64: 1, 4, 256>}, {transform_indices = @transform_1, window_bounds = array<i64: 1, 1, 256>}, {transform_indices = @transform_2, window_bounds = array<i64: 1, 1, 4, 1>}, {transform_indices = @transform_3, window_bounds = array<i64: 1, 1, 4, 1>}]} {
    %c0_i32 = arith.constant 0 : i32
    %0 = arith.cmpi eq, %arg2, %c0_i32 : i32
    %1 = arith.extui %0 : i1 to i32
    %c0_i32_0 = arith.constant 0 : i32
    %2 = arith.cmpi ne, %1, %c0_i32_0 : i32
    scf.if %2 {
      %cst_28 = arith.constant 0.000000e+00 : f32
      %45 = vector.broadcast %cst_28 : f32 to vector<1x1x4x1xf32>
      %c0_29 = arith.constant 0 : index
      %c0_30 = arith.constant 0 : index
      %c0_31 = arith.constant 0 : index
      %c0_32 = arith.constant 0 : index
      %46 = vector.load %arg5[%c0_29, %c0_30, %c0_31, %c0_32] : memref<1x1x4x1xf32, #tpu.memory_space<vmem>>, vector<1x1x4x1xf32>
      tpu.vector_store %arg5[%c0_29, %c0_30, %c0_31, %c0_32], %45 {strides = array<i32>} : memref<1x1x4x1xf32, #tpu.memory_space<vmem>>, vector<1x1x4x1xf32>,
      %cst_33 = arith.constant 0.000000e+00 : f32
      %47 = vector.broadcast %cst_33 : f32 to vector<1x1x4x1xf32>
      %c0_34 = arith.constant 0 : index
      %c0_35 = arith.constant 0 : index
      %c0_36 = arith.constant 0 : index
      %c0_37 = arith.constant 0 : index
      %48 = vector.load %arg6[%c0_34, %c0_35, %c0_36, %c0_37] : memref<1x1x4x1xf32, #tpu.memory_space<vmem>>, vector<1x1x4x1xf32>
      tpu.vector_store %arg6[%c0_34, %c0_35, %c0_36, %c0_37], %47 {strides = array<i32>} : memref<1x1x4x1xf32, #tpu.memory_space<vmem>>, vector<1x1x4x1xf32>,
    } else {
    }
    %c0 = arith.constant 0 : index
    %c0_1 = arith.constant 0 : index
    %c0_2 = arith.constant 0 : index
    %3 = vector.load %arg3[%c0, %c0_1, %c0_2] : memref<1x4x256xf32, #tpu.memory_space<vmem>>, vector<1x4x256xf32>
    %4 = vector.shape_cast %3 : vector<1x4x256xf32> to vector<4x256xf32>
    %c0_3 = arith.constant 0 : index
    %c0_4 = arith.constant 0 : index
    %c0_5 = arith.constant 0 : index
    %5 = vector.load %arg4[%c0_3, %c0_4, %c0_5] : memref<1x1x256xi8, #tpu.memory_space<vmem>>, vector<1x1x256xi8>
    %6 = vector.shape_cast %5 : vector<1x1x256xi8> to vector<1x256xi8>
    %7 = arith.extsi %6 : vector<1x256xi8> to vector<1x256xi32>
    %cst = arith.constant dense<0xFF800000> : vector<256xf32>
    %8 = vector.multi_reduction <maximumf>, %4, %cst [0] : vector<4x256xf32> to vector<256xf32>
    %9 = vector.shape_cast %8 : vector<256xf32> to vector<1x256xf32>
    %10 = vector.broadcast %9 : vector<1x256xf32> to vector<4x256xf32>
    %11 = arith.subf %4, %10 : vector<4x256xf32>
    %12 = math.exp %11 : vector<4x256xf32>
    %cst_6 = arith.constant dense<0.000000e+00> : vector<256xf32>
    %13 = vector.multi_reduction <add>, %12, %cst_6 [0] : vector<4x256xf32> to vector<256xf32>
    %14 = vector.shape_cast %13 : vector<256xf32> to vector<1x256xf32>
    %15 = tpu.reciprocal %14 {approx = true} : vector<1x256xf32> -> vector<1x256xf32>
    %16 = arith.mulf %14, %15 : vector<1x256xf32>
    %cst_7 = arith.constant 2.000000e+00 : f32
    %17 = vector.broadcast %cst_7 : f32 to vector<1x256xf32>
    %18 = arith.subf %17, %16 : vector<1x256xf32>
    %19 = arith.mulf %15, %18 : vector<1x256xf32>
    %20 = vector.broadcast %19 : vector<1x256xf32> to vector<4x256xf32>
    %21 = arith.mulf %12, %20 : vector<4x256xf32>
    %22 = tpu.iota {dimensions = array<i32: 0>} : vector<4x1xi32>
    %23 = vector.broadcast %22 : vector<4x1xi32> to vector<4x256xi32>
    %24 = vector.broadcast %7 : vector<1x256xi32> to vector<4x256xi32>
    %25 = arith.cmpi eq, %23, %24 : vector<4x256xi32>
    %cst_8 = arith.constant 0.000000e+00 : f32
    %26 = vector.broadcast %cst_8 : f32 to vector<4x256xf32>
    %27 = arith.select %25, %21, %26 : vector<4x256xi1>, vector<4x256xf32>
    %cst_9 = arith.constant dense<0.000000e+00> : vector<4xf32>
    %28 = vector.multi_reduction <add>, %27, %cst_9 [1] : vector<4x256xf32> to vector<4xf32>
    %29 = vector.shape_cast %28 : vector<4xf32> to vector<4x1xf32>
    %cst_10 = arith.constant dense<0.000000e+00> : vector<4xf32>
    %30 = vector.multi_reduction <add>, %21, %cst_10 [1] : vector<4x256xf32> to vector<4xf32>
    %31 = vector.shape_cast %30 : vector<4xf32> to vector<4x1xf32>
    %32 = arith.extui %25 : vector<4x256xi1> to vector<4x256xi32>
    %33 = arith.sitofp %32 : vector<4x256xi32> to vector<4x256xf32>
    %cst_11 = arith.constant dense<0.000000e+00> : vector<4xf32>
    %34 = vector.multi_reduction <add>, %33, %cst_11 [1] : vector<4x256xf32> to vector<4xf32>
    %35 = vector.shape_cast %34 : vector<4xf32> to vector<4x1xf32>
    %c0_12 = arith.constant 0 : index
    %c0_13 = arith.constant 0 : index
    %c0_14 = arith.constant 0 : index
    %c0_15 = arith.constant 0 : index
    %36 = vector.load %arg5[%c0_12, %c0_13, %c0_14, %c0_15] : memref<1x1x4x1xf32, #tpu.memory_space<vmem>>, vector<1x1x4x1xf32>
    %37 = vector.shape_cast %29 : vector<4x1xf32> to vector<1x1x4x1xf32>
    %38 = arith.addf %36, %37 : vector<1x1x4x1xf32>
    %c0_16 = arith.constant 0 : index
    %c0_17 = arith.constant 0 : index
    %c0_18 = arith.constant 0 : index
    %c0_19 = arith.constant 0 : index
    %39 = vector.load %arg5[%c0_16, %c0_17, %c0_18, %c0_19] : memref<1x1x4x1xf32, #tpu.memory_space<vmem>>, vector<1x1x4x1xf32>
    tpu.vector_store %arg5[%c0_16, %c0_17, %c0_18, %c0_19], %38 {strides = array<i32>} : memref<1x1x4x1xf32, #tpu.memory_space<vmem>>, vector<1x1x4x1xf32>,
    %c0_20 = arith.constant 0 : index
    %c0_21 = arith.constant 0 : index
    %c0_22 = arith.constant 0 : index
    %c0_23 = arith.constant 0 : index
    %40 = vector.load %arg6[%c0_20, %c0_21, %c0_22, %c0_23] : memref<1x1x4x1xf32, #tpu.memory_space<vmem>>, vector<1x1x4x1xf32>
    %41 = arith.addf %31, %35 : vector<4x1xf32>
    %42 = vector.shape_cast %41 : vector<4x1xf32> to vector<1x1x4x1xf32>
    %43 = arith.addf %40, %42 : vector<1x1x4x1xf32>
    %c0_24 = arith.constant 0 : index
    %c0_25 = arith.constant 0 : index
    %c0_26 = arith.constant 0 : index
    %c0_27 = arith.constant 0 : index
    %44 = vector.load %arg6[%c0_24, %c0_25, %c0_26, %c0_27] : memref<1x1x4x1xf32, #tpu.memory_space<vmem>>, vector<1x1x4x1xf32>
    tpu.vector_store %arg6[%c0_24, %c0_25, %c0_26, %c0_27], %43 {strides = array<i32>} : memref<1x1x4x1xf32, #tpu.memory_space<vmem>>, vector<1x1x4x1xf32>,
    return
  }
  func.func @transform_0(%arg0: i32, %arg1: i32, %arg2: i32) -> (i32, i32, i32) {
    %c1_i32 = arith.constant 1 : i32
    %0 = arith.muli %arg1, %c1_i32 : i32
    %1 = arith.addi %0, %arg2 : i32
    %c0_i32 = arith.constant 0 : i32
    %c0_i32_0 = arith.constant 0 : i32
    return %arg0, %c0_i32, %1 : i32, i32, i32
  }
  func.func @transform_1(%arg0: i32, %arg1: i32, %arg2: i32) -> (i32, i32, i32) {
    %c1_i32 = arith.constant 1 : i32
    %0 = arith.muli %arg1, %c1_i32 : i32
    %1 = arith.addi %0, %arg2 : i32
    %c0_i32 = arith.constant 0 : i32
    %c0_i32_0 = arith.constant 0 : i32
    return %arg0, %c0_i32, %1 : i32, i32, i32
  }
  func.func @transform_2(%arg0: i32, %arg1: i32, %arg2: i32) -> (i32, i32, i32, i32) {
    %c0_i32 = arith.constant 0 : i32
    %c0_i32_0 = arith.constant 0 : i32
    %c0_i32_1 = arith.constant 0 : i32
    return %arg0, %arg1, %c0_i32, %c0_i32_0 : i32, i32, i32, i32
  }
  func.func @transform_3(%arg0: i32, %arg1: i32, %arg2: i32) -> (i32, i32, i32, i32) {
    %c0_i32 = arith.constant 0 : i32
    %c0_i32_0 = arith.constant 0 : i32
    %c0_i32_1 = arith.constant 0 : i32
    return %arg0, %arg1, %c0_i32, %c0_i32_0 : i32, i32, i32, i32
  }
}

</mosaic_0001>

<llo_original>
// kernel: tpu_custom_call.1
$region0: #{tpu_custom_call.1}
  #allocation0 [shape = 'u32[]', space=smem, size = 0x4, offset = 0x4, fixed_abs, tag = 'smem constant byte address 0x4 - core index']
  #allocation1 [shape = 'u32[144,128]{1,0:T(1,128)}', space=vmem, size = 0x12000, scoped, tag = 'internal scratch']
  %s0 = inlined_call_operand.hbm [shape: f32[2,4,256], index: 0, kind: input, shape index: {}]
  %s1 = inlined_call_operand.vmem [shape: s8[2,1,256], index: 1, kind: input, shape index: {}]
  %s2 = inlined_call_operand.vmem [shape: f32[2,1,4,1], index: 2, kind: output, shape index: {0}]
  %s3 = inlined_call_operand.vmem [shape: f32[2,1,4,1], index: 3, kind: output, shape index: {1}]
  %4 = xla_tuple %s2, %s3
  %s5 = sld [smem:[#allocation0]]
  $region57: #{tpu_custom_call.1} parent=0
    _
  %s7 = ssub.s32 1, %s5
  %s8 = scalar_select 0, %s7, %s5
  $region1: #{tpu_custom_call.1} parent=0
    #allocation2 [shape = 'u8[8192]{0}', space=vmem, size = 0x2000, scoped, tag = 'input window, operand 0']
    #allocation3 [shape = 's32[2]{0}', space=sflag, size = 0x8, scoped, tag = 'scoped memory for tpu_custom_call.1']
    %9 = vsyncpa [#allocation3], 0
    %s10 = scalar_lea.sflag [#allocation3], 1
    %11 = vsyncpa %s10, 0
    loop: start=0, step=1, limit=4
    $region2: #{tpu_custom_call.1} parent=1 // loop_pre_header
      _
    $region3: #{tpu_custom_call.1} parent=1 // loop_header
      %s13 = sphi 0, %s17
      %p14 = scmp.ge.s32.totalorder %s13, 4
      %s20 = sphi 0, %s39
      %s21 = sphi 0, %s35
      %s22 = sphi 0, %s31
      %s23 = sphi 0, %s20
      %s24 = sphi 0, %s21
      %s25 = sphi 0, %s22
      %s26 = sphi 0, %s23
      %s27 = sphi 0, %s24
      %s28 = sphi 0, %s25
      %s46 = sphi 0, %s48
      %s49 = sphi 0, %s46
      %s50 = sphi 0, %s49
      %s66 = sphi 0, %s50
      %s76 = sphi 0, %s78
      %s79 = sphi 0, %s76
      %s80 = sphi 0, %s79
      %s96 = sphi 0, %s80
      %s104 = sphi 0, %s106
      %s107 = sphi 0, %s104
      %s108 = sphi 0, %s107
      %s124 = sphi 0, %s108
      %s132 = sphi 0, %s134
      %s135 = sphi 0, %s132
      %s136 = sphi 0, %s135
      %s152 = sphi 0, %s136
    $region4: #{tpu_custom_call.1} parent=1 // loop_header_branch
      %16 = sbr.rel (%p14) target = $region8
    $region5: #{tpu_custom_call.1} parent=1 // loop_body
      %s18 = ssub.s32 %s13, 1
      %s19 = ssub.s32 %s13, 2
      %s29 = sadd.s32 1, %s22
      %p30 = scmp.ge.s32.totalorder %s29, 1
      %s31 = scalar_select %p30, 0, %s29
      %s32 = sadd.s32 1, %s21
      %s33 = scalar_select %p30, %s32, %s21
      %p34 = scmp.ge.s32.totalorder %s33, 1
      %s35 = scalar_select %p34, 0, %s33
      %s36 = sadd.s32 1, %s20
      %s37 = scalar_select %p34, %s36, %s20
      %p38 = scmp.ge.s32.totalorder %s37, 2
      %s39 = scalar_select %p38, 0, %s37
      %s40 = sadd.s32 %s21, %s22
      %s41 = sadd.s32 %s35, %s31
      %s42 = ssub.s32 %s20, %s39
      %s43 = ssub.s32 %s40, %s41
      %s44 = sor.u32 %s42, %s43
      %p45 = scmp.eq.s32.totalorder %s44, 0
      %s47 = sadd.s32 %s46, 1
      %s48 = scalar_select %p45, %s46, %s47
      %p51 = pneg %p45
      %p52 = scmp.eq.s32.totalorder %s13, 1
      %p53 = por %p51, %p52
      %p54 = scmp.ne.s32.totalorder %s46, %s49
      %p55 = scmp.eq.s32.totalorder %s13, 0
      %p56 = por %p54, %p55
      %p57 = scmp.ne.s32.totalorder %s46, %s49
      %p58 = scmp.eq.s32.totalorder %s18, 1
      %p59 = por %p57, %p58
      %p60 = scmp.ne.s32.totalorder %s49, %s50
      %p61 = scmp.eq.s32.totalorder %s18, 0
      %p62 = por %p60, %p61
      %p63 = scmp.ne.s32.totalorder %s49, %s50
      %p64 = scmp.eq.s32.totalorder %s19, 1
      %p65 = por %p63, %p64
      %p67 = scmp.ne.s32.totalorder %s50, %s66
      %p68 = scmp.eq.s32.totalorder %s19, 0
      %p69 = por %p67, %p68
      %s70 = sadd.s32 %s21, %s22
      %s71 = sadd.s32 %s35, %s31
      %s72 = ssub.s32 %s20, %s39
      %s73 = ssub.s32 %s70, %s71
      %s74 = sor.u32 %s72, %s73
      %p75 = scmp.eq.s32.totalorder %s74, 0
      %s77 = sadd.s32 %s76, 1
      %s78 = scalar_select %p75, %s76, %s77
      %p81 = pneg %p75
      %p82 = scmp.eq.s32.totalorder %s13, 1
      %p83 = por %p81, %p82
      %p84 = scmp.ne.s32.totalorder %s76, %s79
      %p85 = scmp.eq.s32.totalorder %s13, 0
      %p86 = por %p84, %p85
      %p87 = scmp.ne.s32.totalorder %s76, %s79
      %p88 = scmp.eq.s32.totalorder %s18, 1
      %p89 = por %p87, %p88
      %p90 = scmp.ne.s32.totalorder %s79, %s80
      %p91 = scmp.eq.s32.totalorder %s18, 0
      %p92 = por %p90, %p91
      %p93 = scmp.ne.s32.totalorder %s79, %s80
      %p94 = scmp.eq.s32.totalorder %s19, 1
      %p95 = por %p93, %p94
      %p97 = scmp.ne.s32.totalorder %s80, %s96
      %p98 = scmp.eq.s32.totalorder %s19, 0
      %p99 = por %p97, %p98
      %s100 = ssub.s32 %s20, %s39
      %s101 = ssub.s32 %s21, %s35
      %s102 = sor.u32 %s100, %s101
      %p103 = scmp.eq.s32.totalorder %s102, 0
      %s105 = sadd.s32 %s104, 1
      %s106 = scalar_select %p103, %s104, %s105
      %p109 = pneg %p103
      %p110 = scmp.eq.s32.totalorder %s13, 1
      %p111 = por %p109, %p110
      %p112 = scmp.ne.s32.totalorder %s104, %s107
      %p113 = scmp.eq.s32.totalorder %s13, 0
      %p114 = por %p112, %p113
      %p115 = scmp.ne.s32.totalorder %s104, %s107
      %p116 = scmp.eq.s32.totalorder %s18, 1
      %p117 = por %p115, %p116
      %p118 = scmp.ne.s32.totalorder %s107, %s108
      %p119 = scmp.eq.s32.totalorder %s18, 0
      %p120 = por %p118, %p119
      %p121 = scmp.ne.s32.totalorder %s107, %s108
      %p122 = scmp.eq.s32.totalorder %s19, 1
      %p123 = por %p121, %p122
      %p125 = scmp.ne.s32.totalorder %s108, %s124
      %p126 = scmp.eq.s32.totalorder %s19, 0
      %p127 = por %p125, %p126
      %s128 = ssub.s32 %s20, %s39
      %s129 = ssub.s32 %s21, %s35
      %s130 = sor.u32 %s128, %s129
      %p131 = scmp.eq.s32.totalorder %s130, 0
      %s133 = sadd.s32 %s132, 1
      %s134 = scalar_select %p131, %s132, %s133
      %p137 = pneg %p131
      %p138 = scmp.eq.s32.totalorder %s13, 1
      %p139 = por %p137, %p138
      %p140 = scmp.ne.s32.totalorder %s132, %s135
      %p141 = scmp.eq.s32.totalorder %s13, 0
      %p142 = por %p140, %p141
      %p143 = scmp.ne.s32.totalorder %s132, %s135
      %p144 = scmp.eq.s32.totalorder %s18, 1
      %p145 = por %p143, %p144
      %p146 = scmp.ne.s32.totalorder %s135, %s136
      %p147 = scmp.eq.s32.totalorder %s18, 0
      %p148 = por %p146, %p147
      %p149 = scmp.ne.s32.totalorder %s135, %s136
      %p150 = scmp.eq.s32.totalorder %s19, 1
      %p151 = por %p149, %p150
      %p153 = scmp.ne.s32.totalorder %s136, %s152
      %p154 = scmp.eq.s32.totalorder %s19, 0
      %p155 = por %p153, %p154
      %p156 = scmp.le.s32.totalorder 1, %s13
      %p157 = scmp.lt.s32.totalorder %s13, 3
      %p158 = pnand %p156, %p157
      %p159 = pneg %p158
      // Predicated region
      $region9: #{tpu_custom_call.1} parent=5 // pred_check
        _
      $region10: #{tpu_custom_call.1} parent=5 // pred_check_branch
        %161 = sbr.rel (%p158) target = $region12
      $region11: #{tpu_custom_call.1} parent=5 // pred_region
        %s162 = ssub.s32 %s13, 1
      $region12: #{tpu_custom_call.1} parent=5 // pred_fallthru
        _
      %p163 = scmp.lt.s32.totalorder %s13, 2
      // Predicated region
      $region13: #{tpu_custom_call.1} parent=5 // pred_check
        %p164 = pneg %p163
      $region14: #{tpu_custom_call.1} parent=5 // pred_check_branch
        %166 = sbr.rel (%p164) target = $region16
      $region15: #{tpu_custom_call.1} parent=5 // pred_region
        // Predicated region
        $region17: #{tpu_custom_call.1} parent=15 // pred_check
          %p167 = pneg %p56
        $region18: #{tpu_custom_call.1} parent=15 // pred_check_branch
          %169 = sbr.rel (%p167) target = $region20
        $region19: #{tpu_custom_call.1} parent=15 // pred_region
          %s170 = sand.u32 %s46, 1
          %s171 = scalar_lea.sflag [#allocation3], %s170
          %s172 = sand.u32 %s46, 1
          %s173 = smul.addr %s172, 8
          %s174 = scalar_lea.vmem [#allocation2], %s173
          %s175 = sadd.s32 %s21, %s22
          %s176 = smul.u32 2, %s175
          %s178 = ssub.s32 128, 128
          %179 = vsyncadd %s171, %s178
          %s180 = smul.addr %s20, 2
          %s181 = sadd.s32 %s176, %s180
          %s182 = smul.addr %s181, 64
          %s183 = scalar_lea.hbm %s0, %s182
          %s185 = sshll.u32 %s174, 4
          %s186 = int_to_ptr.vmem [resolvable:$true] %s185
          %188 = dma.hbm_to_vmem [thread:$0]  %s183, 128, %s186, %s171
        $region20: #{tpu_custom_call.1} parent=15 // pred_fallthru
          _
        // Predicated region
        $region21: #{tpu_custom_call.1} parent=15 // pred_check
          %p189 = pneg %p86
        $region22: #{tpu_custom_call.1} parent=15 // pred_check_branch
          %191 = sbr.rel (%p189) target = $region24
        $region23: #{tpu_custom_call.1} parent=15 // pred_region
          %s192 = sadd.s32 %s21, %s22
          %s193 = smul.u32 2, %s192
          %p194 = scmp.lt.s32.totalorder %s20, 1
          %s195 = scalar_select %p194, %s20, 1
          %p196 = scmp.lt.s32.totalorder %s193, 1
          %s197 = scalar_select %p196, %s193, 1
          %s198 = smul.addr %s195, 2
          %s199 = sadd.s32 %s197, %s198
          %s200 = scalar_lea.vmem %s1, %s199
          %s201 = sadd.s32 %s21, %s22
          %s202 = smul.u32 2, %s201
        $region24: #{tpu_custom_call.1} parent=15 // pred_fallthru
          _
      $region16: #{tpu_custom_call.1} parent=5 // pred_fallthru
        _
      %p203 = scmp.le.s32.totalorder 1, %s13
      %p204 = scmp.lt.s32.totalorder %s13, 3
      %p205 = pnand %p203, %p204
      %p206 = pneg %p205
      // Predicated region
      $region25: #{tpu_custom_call.1} parent=5 // pred_check
        _
      $region26: #{tpu_custom_call.1} parent=5 // pred_check_branch
        %208 = sbr.rel (%p205) target = $region28
      $region27: #{tpu_custom_call.1} parent=5 // pred_region
        %s209 = ssub.s32 %s13, 1
        %s210 = sand.u32 %s49, 1
        %s211 = scalar_lea.sflag [#allocation3], %s210
        %s212 = sand.u32 %s49, 1
        %s213 = smul.addr %s212, 8
        %s214 = scalar_lea.vmem [#allocation2], %s213
        // Predicated region
        $region29: #{tpu_custom_call.1} parent=27 // pred_check
          %p215 = pneg %p62
        $region30: #{tpu_custom_call.1} parent=27 // pred_check_branch
          %217 = sbr.rel (%p215) target = $region32
        $region31: #{tpu_custom_call.1} parent=27 // pred_region
          %218 = dma.done %s211, 128
        $region32: #{tpu_custom_call.1} parent=27 // pred_fallthru
          _
        %s219 = sand.u32 %s49, 1
        %s220 = scalar_lea.sflag [#allocation3], %s219
        %s221 = sand.u32 %s49, 1
        %s222 = smul.addr %s221, 8
        %s223 = scalar_lea.vmem [#allocation2], %s222
        %p224 = pneg %p62
        %p225 = pneg %p59
        %s226 = sadd.s32 %s24, %s25
        %s227 = smul.u32 2, %s226
        %p228 = scmp.lt.s32.totalorder %s23, 1
        %s229 = scalar_select %p228, %s23, 1
        %p230 = scmp.lt.s32.totalorder %s227, 1
        %s231 = scalar_select %p230, %s227, 1
        %s232 = smul.addr %s229, 2
        %s233 = sadd.s32 %s231, %s232
        %s234 = scalar_lea.vmem %s1, %s233
        %p235 = pneg %p92
        %p236 = pneg %p89
        %p237 = pneg %p120
        %p238 = pneg %p117
        %p239 = scmp.lt.s32.totalorder %s23, 1
        %s240 = scalar_select %p239, %s23, 1
        %p241 = scmp.lt.s32.totalorder %s24, 0
        %s242 = scalar_select %p241, %s24, 0
        %s243 = sadd.s32 %s242, %s240
        %s244 = smul.addr %s243, 4
        %s245 = scalar_lea.vmem %s2, %s244
        %p246 = pneg %p148
        %p247 = pneg %p145
        %p248 = scmp.lt.s32.totalorder %s23, 1
        %s249 = scalar_select %p248, %s23, 1
        %p250 = scmp.lt.s32.totalorder %s24, 0
        %s251 = scalar_select %p250, %s24, 0
        %s252 = sadd.s32 %s251, %s249
        %s253 = smul.addr %s252, 4
        %s254 = scalar_lea.vmem %s3, %s253
        %s255 = sadd.s32 %s24, %s25
        %s256 = smul.u32 2, %s255
        %s257 = sadd.s32 %s24, %s25
        %s258 = smul.u32 2, %s257
        %p259 = scmp.lt.s32.totalorder %s23, 1
        %s260 = scalar_select %p259, %s23, 1
        %p261 = scmp.lt.s32.totalorder %s258, 1
        %s262 = scalar_select %p261, %s258, 1
        %s263 = smul.addr %s260, 2
        %s264 = sadd.s32 %s262, %s263
        %s265 = scalar_lea.vmem %s1, %s264
        %s266 = sadd.s32 %s24, %s25
        %s267 = smul.u32 2, %s266
        %p268 = scmp.lt.s32.totalorder %s23, 1
        %s269 = scalar_select %p268, %s23, 1
        %p270 = scmp.lt.s32.totalorder %s24, 0
        %s271 = scalar_select %p270, %s24, 0
        %s272 = sadd.s32 %s271, %s269
        %s273 = smul.addr %s272, 4
        %s274 = scalar_lea.vmem %s2, %s273
        %p275 = scmp.lt.s32.totalorder %s23, 1
        %s276 = scalar_select %p275, %s23, 1
        %p277 = scmp.lt.s32.totalorder %s24, 0
        %s278 = scalar_select %p277, %s24, 0
        %s279 = sadd.s32 %s278, %s276
        %s280 = smul.addr %s279, 4
        %s281 = scalar_lea.vmem %s3, %s280
        %p282 = scmp.eq.s32.totalorder %s25, 0
        // Predicated region
        $region33: #{tpu_custom_call.1} parent=27 // pred_check
          %p283 = pneg %p282
        $region34: #{tpu_custom_call.1} parent=27 // pred_check_branch
          %285 = sbr.rel (%p283) target = $region36
        $region35: #{tpu_custom_call.1} parent=27 // pred_region
          %vm286 = vcmask 3072
          %287 = vst.msk [vmem:[%s274] sm:$0xf] %vm286, 0.0
          %288 = vst.msk [vmem:[%s281] sm:$0xf] %vm286, 0.0
        $region36: #{tpu_custom_call.1} parent=27 // pred_fallthru
          _
        %v289 = vld [vmem:[%s214] sm:$0xff]
        %v290 = vld [vmem:[%s265] sm:$0x3]
        %v291 = vunpack.c.0.s8 %v290
        %v293 = vcombine.high %v289, %v289
        %vm295 = vcmask 1043456
        %v296 = vsel %vm295, %v289, -inf
        %v297 = vrot.slane %v296, 4
        %v298 = vmax.f32 %v296, %v297
        %v299 = vrot.slane %v298, 2
        %v300 = vmax.f32 %v298, %v299
        %v301 = vrot.slane %v300, 1
        %v302 = vmax.f32 %v300, %v301
        %v303 = vsel %vm295, %v293, -inf
        %v304 = vrot.slane %v303, 4
        %v305 = vmax.f32 %v303, %v304
        %v306 = vrot.slane %v305, 2
        %v307 = vmax.f32 %v305, %v306
        %v308 = vrot.slane %v307, 1
        %v309 = vmax.f32 %v307, %v308
        %v312 = vcombine.low %v302, %v309
        %v314 = vsub.f32 %v289, %v312
        %v315 = vmul.f32 %v314, 1.442695
        %v316 = vpow.pop %v315
        %v318 = vcombine.high %v316, %v316
        %v320 = vsel %vm295, %v316, 0.0
        %v321 = vrot.slane %v320, 4
        %v322 = vadd.f32 %v320, %v321
        %v323 = vrot.slane %v322, 2
        %v324 = vadd.f32 %v322, %v323
        %v325 = vrot.slane %v324, 1
        %v326 = vadd.f32 %v324, %v325
        %v327 = vsel %vm295, %v318, 0.0
        %v328 = vrot.slane %v327, 4
        %v329 = vadd.f32 %v327, %v328
        %v330 = vrot.slane %v329, 2
        %v331 = vadd.f32 %v329, %v330
        %v332 = vrot.slane %v331, 1
        %v333 = vadd.f32 %v331, %v332
        %v334 = vrcp.pop %v326
        %v335 = vrcp.pop %v333
        %v336 = vmul.f32 %v326, %v334
        %v337 = vmul.f32 %v333, %v335
        %v338 = vsub.f32 2.0, %v336
        %v339 = vsub.f32 2.0, %v337
        %v340 = vmul.f32 %v334, %v338
        %v341 = vmul.f32 %v335, %v339
        %v344 = vcombine.low %v340, %v341
        %v346 = vmul.f32 %v316, %v344
        %v347 = vlaneseq
        %v348 = vshrl.u32 %v347, 7
        %v349 = vlaneseq
        %v350 = vshrl.u32 %v349, 7
        %v351 = vsub.s32 0, %v350
        %v352 = vrot.slane %v291, %v351
        %v353 = vlaneseq
        %v354 = vshrl.u32 %v353, 7
        %v355 = vsub.s32 4, %v354
        %v356 = vrot.slane %v291, %v355
        %v357 = vlaneseq
        %v358 = vshrl.u32 %v357, 7
        %v359 = vsub.s32 0, %v358
        %v360 = vrot.slane %v352, %v359
        %v361 = vlaneseq
        %v362 = vshrl.u32 %v361, 7
        %v363 = vsub.s32 0, %v362
        %v364 = vrot.slane %v356, %v363
        %vm365 = vcmp.eq.s32.totalorder %v348, %v360
        %vm366 = vcmp.eq.s32.totalorder %v348, %v364
        %v368 = vcombine.high %v346, %v346
        %v370 = vsel %vm365, %v346, 0.0
        %v371 = vsel %vm366, %v368, 0.0
        %v372 = vsel %vm295, %v370, 0.0
        %v373 = vsel %vm295, %v371, 0.0
        %v374 = vadd.f32 %v372, %v373
        %375 = vadd.xlane.f32.xlu0 %v374
        %v376 = vpop.xlane.xlu0 %375
        %v377 = vsel %vm295, %v346, 0.0
        %v378 = vsel %vm295, %v368, 0.0
        %v379 = vadd.f32 %v377, %v378
        %380 = vadd.xlane.f32.xlu0 %v379
        %v381 = vpop.xlane.xlu0 %380
        %v382 = vsel %vm365, 1, 0
        %v383 = vsel %vm366, 1, 0
        %v384 = vcvt.s32.f32 %v382
        %v385 = vcvt.s32.f32 %v383
        %v386 = vsel %vm295, %v384, 0.0
        %v387 = vsel %vm295, %v385, 0.0
        %v388 = vadd.f32 %v386, %v387
        %389 = vadd.xlane.f32.xlu0 %v388
        %v390 = vpop.xlane.xlu0 %389
        %v391 = vld [vmem:[%s274] sm:$0xf]
        %v392 = vadd.f32 %v391, %v376
        %vm393 = vcmask 3072
        %394 = vst.msk [vmem:[%s274] sm:$0xf] %vm393, %v392
        %v395 = vld [vmem:[%s281] sm:$0xf]
        %v396 = vadd.f32 %v381, %v390
        %v397 = vadd.f32 %v395, %v396
        %398 = vst.msk [vmem:[%s281] sm:$0xf] %vm393, %v397
        %p399 = scmp.lt.s32.totalorder %s23, 1
        %s400 = scalar_select %p399, %s23, 1
        %p401 = scmp.lt.s32.totalorder %s24, 0
        %s402 = scalar_select %p401, %s24, 0
        %s403 = sadd.s32 %s402, %s400
        %s404 = smul.addr %s403, 4
        %s405 = scalar_lea.vmem %s2, %s404
        %p406 = scmp.lt.s32.totalorder %s23, 1
        %s407 = scalar_select %p406, %s23, 1
        %p408 = scmp.lt.s32.totalorder %s24, 0
        %s409 = scalar_select %p408, %s24, 0
        %s410 = sadd.s32 %s409, %s407
        %s411 = smul.addr %s410, 4
        %s412 = scalar_lea.vmem %s3, %s411
        // Predicated region
        $region37: #{tpu_custom_call.1} parent=27 // pred_check
          %p413 = pneg %p117
        $region38: #{tpu_custom_call.1} parent=27 // pred_check_branch
          %415 = sbr.rel (%p413) target = $region40
        $region39: #{tpu_custom_call.1} parent=27 // pred_region
          _
        $region40: #{tpu_custom_call.1} parent=27 // pred_fallthru
          _
        // Predicated region
        $region41: #{tpu_custom_call.1} parent=27 // pred_check
          %p416 = pneg %p145
        $region42: #{tpu_custom_call.1} parent=27 // pred_check_branch
          %418 = sbr.rel (%p416) target = $region44
        $region43: #{tpu_custom_call.1} parent=27 // pred_region
          _
        $region44: #{tpu_custom_call.1} parent=27 // pred_fallthru
          _
      $region28: #{tpu_custom_call.1} parent=5 // pred_fallthru
        _
      %p419 = scmp.le.s32.totalorder 2, %s13
      // Predicated region
      $region45: #{tpu_custom_call.1} parent=5 // pred_check
        %p420 = pneg %p419
      $region46: #{tpu_custom_call.1} parent=5 // pred_check_branch
        %422 = sbr.rel (%p420) target = $region48
      $region47: #{tpu_custom_call.1} parent=5 // pred_region
        %s423 = ssub.s32 %s13, 2
        // Predicated region
        $region49: #{tpu_custom_call.1} parent=47 // pred_check
          %p424 = pneg %p123
        $region50: #{tpu_custom_call.1} parent=47 // pred_check_branch
          %426 = sbr.rel (%p424) target = $region52
        $region51: #{tpu_custom_call.1} parent=47 // pred_region
          %p427 = scmp.lt.s32.totalorder %s26, 1
          %s428 = scalar_select %p427, %s26, 1
          %p429 = scmp.lt.s32.totalorder %s27, 0
          %s430 = scalar_select %p429, %s27, 0
          %s431 = sadd.s32 %s430, %s428
          %s432 = smul.addr %s431, 4
          %s433 = scalar_lea.vmem %s2, %s432
        $region52: #{tpu_custom_call.1} parent=47 // pred_fallthru
          _
        // Predicated region
        $region53: #{tpu_custom_call.1} parent=47 // pred_check
          %p434 = pneg %p151
        $region54: #{tpu_custom_call.1} parent=47 // pred_check_branch
          %436 = sbr.rel (%p434) target = $region56
        $region55: #{tpu_custom_call.1} parent=47 // pred_region
          %p437 = scmp.lt.s32.totalorder %s26, 1
          %s438 = scalar_select %p437, %s26, 1
          %p439 = scmp.lt.s32.totalorder %s27, 0
          %s440 = scalar_select %p439, %s27, 0
          %s441 = sadd.s32 %s440, %s438
          %s442 = smul.addr %s441, 4
          %s443 = scalar_lea.vmem %s3, %s442
        $region56: #{tpu_custom_call.1} parent=47 // pred_fallthru
          _
      $region48: #{tpu_custom_call.1} parent=5 // pred_fallthru
        _
    $region6: #{tpu_custom_call.1} parent=1 // loop_footer
      %s17 = sadd.s32 1, %s13
    $region7: #{tpu_custom_call.1} parent=1 // loop_footer_branch
      %12 = sbr.rel target = $region3
    $region8: #{tpu_custom_call.1} parent=1 // loop_exit
      _
    %444 = vsyncpa [#allocation3], 1
    %s445 = scalar_lea.sflag [#allocation3], 1
    %446 = vsyncpa %s445, 1

</llo_original>
